<compile_context>
chip_gen: v7x
topology: tpu7x:2x2x1
jax: 0.10.0
libtpu: 0.0.40
codegen_flags: <defaults>
</compile_context>

<pallas_src>
import functools
import math

import jax
import jax.numpy as jnp
from jax import lax
from jax.experimental import pallas as pl
from jax.experimental.pallas import tpu as pltpu

_MiB = 1024 * 1024


def _vmem_limit(est_bytes):
    """Explicit scoped-VMEM limit: generous but safe on all generations."""
    return int(min(64 * _MiB, max(32 * _MiB, int(est_bytes * 1.25))))


# -----------------------------------------------------------------------------
# Fused single-pass kernel: whole per-batch (HW, C) slab resident in VMEM.
# -----------------------------------------------------------------------------
def _fused_kernel(x_ref, wa_ref, bns_ref, bnb_ref, wc_ref, o_ref, *, hw,
                  compute_dtype):
    """grid = (N,).

    x_ref:   (1, HW, C)    input dtype (read as produced; no host pre-cast)
    wa_ref:  (C, C)        f32   conv_atten weight [cin, cout]
    bns_ref: (1, C)        f32   folded BN scale
    bnb_ref: (1, C)        f32   folded BN bias
    wc_ref:  (C, Cout)     compute dtype   conv weight [cin, cout]
    o_ref:   (1, HW, Cout) out dtype
    """
    x = x_ref[0]                                                   # (HW, C)
    # GAP accumulated in f32 (one slab sweep, hidden under the slab's HBM DMA).
    gap = jnp.sum(x.astype(jnp.float32), axis=0, keepdims=True) * (1.0 / hw)
    logits = jnp.dot(gap, wa_ref[...], preferred_element_type=jnp.float32)
    scale = 1.0 + jax.nn.sigmoid(logits * bns_ref[...] + bnb_ref[...])  # (1,C)
    # x + x*atten == x * (1 + atten); multiply in x's own dtype (bf16 mul on
    # v6e/v7x when the producer is bf16, f32 mul otherwise), single downcast.
    xs = (x * scale.astype(x.dtype)).astype(compute_dtype)
    o_ref[0] = jnp.dot(xs, wc_ref[...],
                       preferred_element_type=jnp.float32).astype(o_ref.dtype)


# -----------------------------------------------------------------------------
# Two-pass path, pass 1: masked partial spatial sums (VPU-only per step).
# -----------------------------------------------------------------------------
def _gap_partial_kernel(x_ref, o_ref, *, hw, tm, tiles_per_split):
    """grid = (N, S, T); T is the spatial reduction axis ('arbitrary').

    x_ref: (1, TM, C)    input dtype
    o_ref: (1, 1, 8, C)  f32 partial-sum accumulator for this (batch, split)
    """
    s = pl.program_id(1)
    t = pl.program_id(2)

    @pl.when(t == 0)
    def _():
        o_ref[...] = jnp.zeros_like(o_ref)

    # Global row index of this tile, UNclamped: duplicate tiles that the
    # index_map wraps back into range contribute exactly zero via the mask.
    row0 = (s * tiles_per_split + t) * tm
    rows = row0 + lax.broadcasted_iota(jnp.int32, (tm, 1), 0)      # (TM, 1)
    x32 = x_ref[0].astype(jnp.float32)                             # (TM, C)
    xm = jnp.where(rows < hw, x32, 0.0)                            # select, not 0*x
    c = xm.shape[-1]
    if tm % 8 == 0:
        # VPU-only accumulation onto an (8, C) staging sum (pure vreg adds);
        # the single 8 -> 1 sublane reduce happens once, outside the kernel.
        o_ref[0, 0] += jnp.sum(xm.reshape(tm // 8, 8, c), axis=0)
    else:
        # Rare case (HW < row_tile and HW % 8 != 0): accumulate into row 0.
        part = jnp.sum(xm, axis=0, keepdims=True)                  # (1, C)
        row_id = lax.broadcasted_iota(jnp.int32, (8, 1), 0)
        o_ref[0, 0] += jnp.where(row_id == 0, part, 0.0)


# -----------------------------------------------------------------------------
# Two-pass path, pass 2: out[n, rows, :] = x[n, rows, :] @ W_scaled[n]
# (scale already folded into the weight -> pure DMA + MXU per step).
# -----------------------------------------------------------------------------
def _conv_kernel(x_ref, w_ref, o_ref, *, compute_dtype):
    """grid = (N, T); both axes independent ('parallel', 'parallel').

    x_ref: (1, TM, C)     input dtype
    w_ref: (1, C, Cout)   compute dtype (per-batch scaled weight)
    o_ref: (1, TM, Cout)  out dtype
    """
    xc = x_ref[0].astype(compute_dtype)
    o_ref[0] = jnp.dot(xc, w_ref[0],
                       preferred_element_type=jnp.float32).astype(o_ref.dtype)


def feature_selection_module_nhwc(x_nhwc, w_atten, bn_gamma, bn_beta, bn_mean,
                                  bn_var, w_conv, *, eps=1e-5,
                                  compute_dtype=jnp.bfloat16,
                                  out_dtype=jnp.bfloat16,
                                  row_tile=2048,
                                  gap_splits=2,
                                  fused_vmem_budget=24 * _MiB):
    """x_nhwc: (N, H, W, C); w_atten: (C, C); w_conv: (C, Cout). Returns NHWC."""
    N, H, W, C = x_nhwc.shape
    Cin, Cout = w_conv.shape
    assert Cin == C, "w_conv must be (C_in, C_out)"
    HW = H * W

    xbytes = jnp.dtype(x_nhwc.dtype).itemsize
    cbytes = jnp.dtype(compute_dtype).itemsize
    obytes = jnp.dtype(out_dtype).itemsize

    # Channels-last with flattened spatial: free, layout-preserving reshape.
    # NOTE: no dtype cast here -- the kernels read x in its native dtype.
    x = x_nhwc.reshape(N, HW, C)

    # Fold inference-mode BatchNorm into per-channel scale / bias (f32).
    inv_std = 1.0 / jnp.sqrt(bn_var.astype(jnp.float32) + eps)
    g32 = bn_gamma.astype(jnp.float32)
    bn_scale = (g32 * inv_std).reshape(1, C)
    bn_bias = (bn_beta.astype(jnp.float32)
               - bn_mean.astype(jnp.float32) * g32 * inv_std).reshape(1, C)
    wa = w_atten.astype(jnp.float32)
    wc32 = w_conv.astype(jnp.float32)

    # ------------------- fused single-pass path -------------------
    # Budget: double-buffered x block + f32/compute copies + double-buffered
    # output block + f32 matmul result + weights.  Conservative so it is safe
    # on v7x (64 MiB physical VMEM) as well as v5e/v6e.
    est_fused = (HW * (2 * C * xbytes + C * 4 + C * cbytes
                       + 2 * Cout * obytes + Cout * 4)
                 + C * C * 4 + C * Cout * cbytes)
    if est_fused <= fused_vmem_budget:
        wc = w_conv.astype(compute_dtype)
        out = pl.pallas_call(
            functools.partial(_fused_kernel, hw=HW,
                              compute_dtype=compute_dtype),
            out_shape=jax.ShapeDtypeStruct((N, HW, Cout), out_dtype),
            grid_spec=pltpu.PrefetchScalarGridSpec(
                num_scalar_prefetch=0,
                grid=(N,),
                in_specs=[
                    pl.BlockSpec((1, HW, C), lambda n: (n, 0, 0)),
                    pl.BlockSpec((C, C), lambda n: (0, 0)),
                    pl.BlockSpec((1, C), lambda n: (0, 0)),
                    pl.BlockSpec((1, C), lambda n: (0, 0)),
                    pl.BlockSpec((C, Cout), lambda n: (0, 0)),
                ],
                out_specs=pl.BlockSpec((1, HW, Cout), lambda n: (n, 0, 0)),
            ),
            compiler_params=pltpu.CompilerParams(
                dimension_semantics=("parallel",),
                vmem_limit_bytes=_vmem_limit(est_fused)),
        )(x, wa, bn_scale, bn_bias, wc)
        return out.reshape(N, H, W, Cout)

    # ------------------- two-pass fallback -------------------
    row_tile = max(8, (int(row_tile) // 8) * 8)
    TM = HW if HW <= row_tile else row_tile          # (8,128)-legal row tile
    n_tiles = pl.cdiv(HW, TM)
    S = max(1, min(int(gap_splits), n_tiles))        # megacore-splittable axis
    T = pl.cdiv(n_tiles, S)

    if S * T == n_tiles:
        def x_map_p1(n, s, t):
            return (n, s * T + t, 0)
    else:
        # Some (s, t) pairs fall past the last tile; wrap the DMA back in
        # range -- the in-kernel row mask zeroes their contribution.
        def x_map_p1(n, s, t):
            return (n, (s * T + t) % n_tiles, 0)

    est_p1 = TM * C * (2 * xbytes + 8) + 2 * 8 * C * 4 + 64 * 1024
    sums = pl.pallas_call(
        functools.partial(_gap_partial_kernel, hw=HW, tm=TM,
                          tiles_per_split=T),
        out_shape=jax.ShapeDtypeStruct((N, S, 8, C), jnp.float32),
        grid_spec=pltpu.PrefetchScalarGridSpec(
            num_scalar_prefetch=0,
            grid=(N, S, T),
            in_specs=[pl.BlockSpec((1, TM, C), x_map_p1)],
            out_specs=pl.BlockSpec((1, 1, 8, C), lambda n, s, t: (n, s, 0, 0)),
        ),
        compiler_params=pltpu.CompilerParams(
            dimension_semantics=("parallel", "parallel", "arbitrary"),
            vmem_limit_bytes=_vmem_limit(est_p1)),
    )(x)

    # Tiny per-batch glue in plain XLA (only N*C-sized tensors): GAP, atten
    # 1x1 conv, folded BN, sigmoid, and folding of the per-(n, c) scale into
    # the conv weight so pass 2 is pure DMA + MXU.
    gap = sums.sum(axis=(1, 2)) * (1.0 / HW)                          # (N, C)
    logits = gap @ wa                                                 # (N, C)
    scale = 1.0 + jax.nn.sigmoid(logits * bn_scale + bn_bias)         # (N, C)
    w_scaled = (scale[:, :, None] * wc32[None]).astype(compute_dtype)  # (N,C,Cout)

    est_p2 = (TM * C * (2 * xbytes + cbytes) + 2 * C * Cout * cbytes
              + TM * Cout * (2 * obytes + 4) + 64 * 1024)
    out = pl.pallas_call(
        functools.partial(_conv_kernel, compute_dtype=compute_dtype),
        out_shape=jax.ShapeDtypeStruct((N, HW, Cout), out_dtype),
        grid_spec=pltpu.PrefetchScalarGridSpec(
            num_scalar_prefetch=0,
            grid=(N, n_tiles),
            in_specs=[
                pl.BlockSpec((1, TM, C), lambda n, t: (n, t, 0)),
                pl.BlockSpec((1, C, Cout), lambda n, t: (n, 0, 0)),
            ],
            out_specs=pl.BlockSpec((1, TM, Cout), lambda n, t: (n, t, 0)),
        ),
        compiler_params=pltpu.CompilerParams(
            dimension_semantics=("parallel", "parallel"),
            vmem_limit_bytes=_vmem_limit(est_p2)),
    )(x, w_scaled)

    return out.reshape(N, H, W, Cout)


def feature_selection_module_nchw(x_nchw, *args, **kwargs):
    """PyTorch-layout compatibility wrapper.

    NOTE: prefer the NHWC entrypoint end-to-end; each transpose here is a full
    extra HBM round trip for a memory-bound op.
    """
    x = jnp.transpose(x_nchw, (0, 2, 3, 1))
    out = feature_selection_module_nhwc(x, *args, **kwargs)
    return jnp.transpose(out, (0, 3, 1, 2))


def _reference_nhwc(x, w_atten, bn_gamma, bn_beta, bn_mean, bn_var, w_conv,
                    eps=1e-5):
    """Pure-JAX f32 reference mirroring the PyTorch forward (inference BN)."""
    gap = jnp.mean(x, axis=(1, 2))                                    # (N, C)
    logits = gap @ w_atten                                            # (N, C)
    bn = (logits - bn_mean) / jnp.sqrt(bn_var + eps) * bn_gamma + bn_beta
    atten = jax.nn.sigmoid(bn)                                        # (N, C)
    xp = x * (1.0 + atten)[:, None, None, :]
    return jnp.einsum('nhwc,cd->nhwd', xp, w_conv)


def _xavier_uniform(key, fan_in, fan_out, shape):
    a = math.sqrt(6.0 / (fan_in + fan_out))
    return jax.random.uniform(key, shape, minval=-a, maxval=a,
                              dtype=jnp.float32)


if __name__ == "__main__":
    key = jax.random.PRNGKey(0)
    k_x, k_wa, k_wc, k_g, k_b, k_m, k_v = jax.random.split(key, 7)

    N, C, H, W = 2, 4, 16, 16   # in_chan = 4
    Cout = 8                    # out_chan = 8

    x_nhwc = jax.random.normal(k_x, (N, H, W, C), dtype=jnp.float32)

    # conv_atten: 1x1 C->C no bias; conv: 1x1 C->Cout no bias. Stored (Cin, Cout).
    w_atten = _xavier_uniform(k_wa, C, C, (C, C))
    w_conv = _xavier_uniform(k_wc, C, Cout, (C, Cout))

    # BatchNorm parameters / running stats (deterministic, non-trivial).
    bn_gamma = 1.0 + 0.1 * jax.random.normal(k_g, (C,), dtype=jnp.float32)
    bn_beta = 0.1 * jax.random.normal(k_b, (C,), dtype=jnp.float32)
    bn_mean = 0.05 * jax.random.normal(k_m, (C,), dtype=jnp.float32)
    bn_var = 1.0 + 0.1 * jax.random.uniform(k_v, (C,), dtype=jnp.float32)

    ref = _reference_nhwc(x_nhwc, w_atten, bn_gamma, bn_beta, bn_mean, bn_var,
                          w_conv)

    # --- fused single-pass path (small slab -> resident in VMEM) ---
    out_fused = feature_selection_module_nhwc(
        x_nhwc, w_atten, bn_gamma, bn_beta, bn_mean, bn_var, w_conv)
    out_fused = jax.block_until_ready(out_fused)
    assert out_fused.shape == (N, H, W, Cout)
    err_f = float(jnp.max(jnp.abs(out_fused.astype(jnp.float32) - ref)))
    assert jnp.allclose(out_fused.astype(jnp.float32), ref, atol=5e-2,
                        rtol=5e-2), f"fused mismatch (max abs err {err_f})"

    # --- two-pass fallback (forced): exercises split GAP grid, the wrapped
    #     index_map, the masked partial tile and the scale-folded conv pass ---
    out_2p = feature_selection_module_nhwc(
        x_nhwc, w_atten, bn_gamma, bn_beta, bn_mean, bn_var, w_conv,
        row_tile=96, gap_splits=2, fused_vmem_budget=0)
    out_2p = jax.block_until_ready(out_2p)
    assert out_2p.shape == (N, H, W, Cout)
    err_2 = float(jnp.max(jnp.abs(out_2p.astype(jnp.float32) - ref)))
    assert jnp.allclose(out_2p.astype(jnp.float32), ref, atol=5e-2,
                        rtol=5e-2), f"two-pass mismatch (max abs err {err_2})"

    # --- NCHW compatibility wrapper agrees with the NHWC path ---
    out_nchw = feature_selection_module_nchw(
        jnp.transpose(x_nhwc, (0, 3, 1, 2)), w_atten, bn_gamma, bn_beta,
        bn_mean, bn_var, w_conv)
    out_nchw = jax.block_until_ready(out_nchw)
    assert out_nchw.shape == (N, Cout, H, W)
    assert jnp.allclose(
        jnp.transpose(out_nchw, (0, 2, 3, 1)).astype(jnp.float32),
        out_fused.astype(jnp.float32), atol=1e-2, rtol=1e-2)

    print("KERNEL_OK")
</pallas_src>

<mosaic_0001>
module attributes {stable_mosaic.version = 11 : i64} {
  func.func @_fused_kernel(%arg0: i32, %arg1: memref<1x256x4xf32, #tpu.memory_space<vmem>>, %arg2: memref<4x4xf32, #tpu.memory_space<vmem>>, %arg3: memref<1x4xf32, #tpu.memory_space<vmem>>, %arg4: memref<1x4xf32, #tpu.memory_space<vmem>>, %arg5: memref<4x8xbf16, #tpu.memory_space<vmem>>, %arg6: memref<1x256x8xbf16, #tpu.memory_space<vmem>>) attributes {dimension_semantics = [#tpu.dimension_semantics<parallel>], iteration_bounds = array<i64: 2>, scalar_prefetch = 0 : i64, scratch_operands = 0 : i64, tpu.core_type = #tpu.core_type<tc>, window_params = [{transform_indices = @transform_0, window_bounds = array<i64: 1, 256, 4>}, {pipeline_mode = #tpu.pipeline_mode<synchronous>, transform_indices = @transform_1, window_bounds = array<i64: 4, 4>}, {pipeline_mode = #tpu.pipeline_mode<synchronous>, transform_indices = @transform_2, window_bounds = array<i64: 1, 4>}, {pipeline_mode = #tpu.pipeline_mode<synchronous>, transform_indices = @transform_3, window_bounds = array<i64: 1, 4>}, {pipeline_mode = #tpu.pipeline_mode<synchronous>, transform_indices = @transform_4, window_bounds = array<i64: 4, 8>}, {transform_indices = @transform_5, window_bounds = array<i64: 1, 256, 8>}]} {
    %c0 = arith.constant 0 : index
    %c0_0 = arith.constant 0 : index
    %c0_1 = arith.constant 0 : index
    %0 = vector.load %arg1[%c0, %c0_0, %c0_1] : memref<1x256x4xf32, #tpu.memory_space<vmem>>, vector<1x256x4xf32>
    %1 = vector.shape_cast %0 : vector<1x256x4xf32> to vector<256x4xf32>
    %cst = arith.constant dense<0.000000e+00> : vector<4xf32>
    %2 = vector.multi_reduction <add>, %1, %cst [0] : vector<256x4xf32> to vector<4xf32>
    %3 = vector.shape_cast %2 : vector<4xf32> to vector<1x4xf32>
    %cst_2 = arith.constant 3.906250e-03 : f32
    %4 = vector.broadcast %cst_2 : f32 to vector<1x4xf32>
    %5 = arith.mulf %3, %4 : vector<1x4xf32>
    %c0_3 = arith.constant 0 : index
    %c0_4 = arith.constant 0 : index
    %6 = vector.load %arg2[%c0_3, %c0_4] : memref<4x4xf32, #tpu.memory_space<vmem>>, vector<4x4xf32>
    %cst_5 = arith.constant dense<0.000000e+00> : vector<1x4xf32>
    %7 = tpu.matmul %5, %6, %cst_5 {dimension_numbers = #tpu.dot_dimension_numbers<[1], [0], [0], [1], [0, 0, 1, 1], [], []>} : vector<1x4xf32>, vector<4x4xf32>, vector<1x4xf32> -> vector<1x4xf32>
    %c0_6 = arith.constant 0 : index
    %c0_7 = arith.constant 0 : index
    %8 = vector.load %arg3[%c0_6, %c0_7] : memref<1x4xf32, #tpu.memory_space<vmem>>, vector<1x4xf32>
    %9 = arith.mulf %7, %8 : vector<1x4xf32>
    %c0_8 = arith.constant 0 : index
    %c0_9 = arith.constant 0 : index
    %10 = vector.load %arg4[%c0_8, %c0_9] : memref<1x4xf32, #tpu.memory_space<vmem>>, vector<1x4xf32>
    %11 = arith.addf %9, %10 : vector<1x4xf32>
    %12 = arith.negf %11 : vector<1x4xf32>
    %13 = math.exp %12 : vector<1x4xf32>
    %cst_10 = arith.constant 1.000000e+00 : f32
    %14 = vector.broadcast %cst_10 : f32 to vector<1x4xf32>
    %15 = arith.addf %14, %13 : vector<1x4xf32>
    %16 = arith.divf %14, %15 : vector<1x4xf32>
    %cst_11 = arith.constant 1.000000e+00 : f32
    %17 = vector.broadcast %cst_11 : f32 to vector<1x4xf32>
    %18 = arith.addf %17, %16 : vector<1x4xf32>
    %19 = vector.broadcast %18 : vector<1x4xf32> to vector<256x4xf32>
    %20 = arith.mulf %1, %19 : vector<256x4xf32>
    %21 = arith.truncf %20 : vector<256x4xf32> to vector<256x4xbf16>
    %c0_12 = arith.constant 0 : index
    %c0_13 = arith.constant 0 : index
    %22 = vector.load %arg5[%c0_12, %c0_13] : memref<4x8xbf16, #tpu.memory_space<vmem>>, vector<4x8xbf16>
    %cst_14 = arith.constant dense<0.000000e+00> : vector<256x8xf32>
    %23 = tpu.matmul %21, %22, %cst_14 {dimension_numbers = #tpu.dot_dimension_numbers<[1], [0], [0], [1], [0, 0, 1, 1], [], []>} : vector<256x4xbf16>, vector<4x8xbf16>, vector<256x8xf32> -> vector<256x8xf32>
    %24 = arith.truncf %23 : vector<256x8xf32> to vector<256x8xbf16>
    %c0_15 = arith.constant 0 : index
    %c0_16 = arith.constant 0 : index
    %c0_17 = arith.constant 0 : index
    %25 = vector.load %arg6[%c0_15, %c0_16, %c0_17] : memref<1x256x8xbf16, #tpu.memory_space<vmem>>, vector<1x256x8xbf16>
    %26 = vector.shape_cast %25 : vector<1x256x8xbf16> to vector<256x8xbf16>
    %27 = vector.shape_cast %24 : vector<256x8xbf16> to vector<1x256x8xbf16>
    tpu.vector_store %arg6[%c0_15, %c0_16, %c0_17], %27 {strides = array<i32>} : memref<1x256x8xbf16, #tpu.memory_space<vmem>>, vector<1x256x8xbf16>,
    return
  }
  func.func @transform_0(%arg0: i32) -> (i32, i32, i32) {
    %c0_i32 = arith.constant 0 : i32
    %c0_i32_0 = arith.constant 0 : i32
    %c0_i32_1 = arith.constant 0 : i32
    return %arg0, %c0_i32, %c0_i32_0 : i32, i32, i32
  }
  func.func @transform_1(%arg0: i32) -> (i32, i32) {
    %c0_i32 = arith.constant 0 : i32
    %c0_i32_0 = arith.constant 0 : i32
    %c0_i32_1 = arith.constant 0 : i32
    return %c0_i32, %c0_i32_0 : i32, i32
  }
  func.func @transform_2(%arg0: i32) -> (i32, i32) {
    %c0_i32 = arith.constant 0 : i32
    %c0_i32_0 = arith.constant 0 : i32
    %c0_i32_1 = arith.constant 0 : i32
    return %c0_i32, %c0_i32_0 : i32, i32
  }
  func.func @transform_3(%arg0: i32) -> (i32, i32) {
    %c0_i32 = arith.constant 0 : i32
    %c0_i32_0 = arith.constant 0 : i32
    %c0_i32_1 = arith.constant 0 : i32
    return %c0_i32, %c0_i32_0 : i32, i32
  }
  func.func @transform_4(%arg0: i32) -> (i32, i32) {
    %c0_i32 = arith.constant 0 : i32
    %c0_i32_0 = arith.constant 0 : i32
    %c0_i32_1 = arith.constant 0 : i32
    return %c0_i32, %c0_i32_0 : i32, i32
  }
  func.func @transform_5(%arg0: i32) -> (i32, i32, i32) {
    %c0_i32 = arith.constant 0 : i32
    %c0_i32_0 = arith.constant 0 : i32
    %c0_i32_1 = arith.constant 0 : i32
    return %arg0, %c0_i32, %c0_i32_0 : i32, i32, i32
  }
}

</mosaic_0001>

<llo_original>
// kernel: tpu_custom_call.1
$region0: #{tpu_custom_call.1}
  #allocation0 [shape = 'u32[]', space=smem, size = 0x4, offset = 0x4, fixed_abs, tag = 'smem constant byte address 0x4 - core index']
  #allocation1 [shape = 'u32[144,128]{1,0:T(1,128)}', space=vmem, size = 0x12000, scoped, tag = 'internal scratch']
  %s0 = inlined_call_operand.vmem [shape: f32[2,256,4], index: 0, kind: input, shape index: {}]
  %s1 = inlined_call_operand.vmem [shape: f32[4,4], index: 1, kind: input, shape index: {}]
  %s2 = inlined_call_operand.vmem [shape: f32[1,4], index: 2, kind: input, shape index: {}]
  %s3 = inlined_call_operand.vmem [shape: f32[1,4], index: 3, kind: input, shape index: {}]
  %s4 = inlined_call_operand.vmem [shape: bf16[4,8], index: 4, kind: input, shape index: {}]
  %s5 = inlined_call_operand.vmem [shape: bf16[2,256,8], index: 5, kind: output, shape index: {}]
  %s6 = sld [smem:[#allocation0]]
  $region53: #{tpu_custom_call.1} parent=0
    _
  %s8 = ssub.s32 1, %s6
  %s9 = scalar_select 0, %s8, %s6
  loop: start=0, step=1, limit=4
  $region2: #{tpu_custom_call.1} parent=0 // loop_pre_header
    _
  $region3: #{tpu_custom_call.1} parent=0 // loop_header
    %s11 = sphi 0, %s15
    %p12 = scmp.ge.s32.totalorder %s11, 4
    %s21 = sphi 0, %s23
    %s24 = sphi 0, %s21
    %s25 = sphi 0, %s24
    %s41 = sphi 0, %s25
    %s45 = sphi 0, %s45
    %s47 = sphi 0, %s45
    %s48 = sphi 0, %s47
    %s62 = sphi 0, %s48
    %s66 = sphi 0, %s66
    %s68 = sphi 0, %s66
    %s69 = sphi 0, %s68
    %s83 = sphi 0, %s69
    %s87 = sphi 0, %s87
    %s89 = sphi 0, %s87
    %s90 = sphi 0, %s89
    %s104 = sphi 0, %s90
    %s108 = sphi 0, %s108
    %s110 = sphi 0, %s108
    %s111 = sphi 0, %s110
    %s125 = sphi 0, %s111
    %s131 = sphi 0, %s133
    %s134 = sphi 0, %s131
    %s135 = sphi 0, %s134
    %s151 = sphi 0, %s135
  $region4: #{tpu_custom_call.1} parent=0 // loop_header_branch
    %14 = sbr.rel (%p12) target = $region8
  $region5: #{tpu_custom_call.1} parent=0 // loop_body
    %s16 = ssub.s32 %s11, 1
    %s17 = ssub.s32 %s11, 2
    %s18 = sadd.s32 %s11, 1
    %s19 = ssub.s32 %s11, %s18
    %p20 = scmp.eq.s32.totalorder %s19, 0
    %s22 = sadd.s32 %s21, 1
    %s23 = scalar_select %p20, %s21, %s22
    %p26 = pneg %p20
    %p27 = scmp.eq.s32.totalorder %s11, 1
    %p28 = por %p26, %p27
    %p29 = scmp.ne.s32.totalorder %s21, %s24
    %p30 = scmp.eq.s32.totalorder %s11, 0
    %p31 = por %p29, %p30
    %p32 = scmp.ne.s32.totalorder %s21, %s24
    %p33 = scmp.eq.s32.totalorder %s16, 1
    %p34 = por %p32, %p33
    %p35 = scmp.ne.s32.totalorder %s24, %s25
    %p36 = scmp.eq.s32.totalorder %s16, 0
    %p37 = por %p35, %p36
    %p38 = scmp.ne.s32.totalorder %s24, %s25
    %p39 = scmp.eq.s32.totalorder %s17, 1
    %p40 = por %p38, %p39
    %p42 = scmp.ne.s32.totalorder %s25, %s41
    %p43 = scmp.eq.s32.totalorder %s17, 0
    %p44 = por %p42, %p43
    %s46 = sadd.s32 %s45, 1
    %p49 = scmp.eq.s32.totalorder %s11, 1
    %p50 = scmp.ne.s32.totalorder %s45, %s47
    %p51 = scmp.eq.s32.totalorder %s11, 0
    %p52 = por %p50, %p51
    %p53 = scmp.ne.s32.totalorder %s45, %s47
    %p54 = scmp.eq.s32.totalorder %s16, 1
    %p55 = por %p53, %p54
    %p56 = scmp.ne.s32.totalorder %s47, %s48
    %p57 = scmp.eq.s32.totalorder %s16, 0
    %p58 = por %p56, %p57
    %p59 = scmp.ne.s32.totalorder %s47, %s48
    %p60 = scmp.eq.s32.totalorder %s17, 1
    %p61 = por %p59, %p60
    %p63 = scmp.ne.s32.totalorder %s48, %s62
    %p64 = scmp.eq.s32.totalorder %s17, 0
    %p65 = por %p63, %p64
    %s67 = sadd.s32 %s66, 1
    %p70 = scmp.eq.s32.totalorder %s11, 1
    %p71 = scmp.ne.s32.totalorder %s66, %s68
    %p72 = scmp.eq.s32.totalorder %s11, 0
    %p73 = por %p71, %p72
    %p74 = scmp.ne.s32.totalorder %s66, %s68
    %p75 = scmp.eq.s32.totalorder %s16, 1
    %p76 = por %p74, %p75
    %p77 = scmp.ne.s32.totalorder %s68, %s69
    %p78 = scmp.eq.s32.totalorder %s16, 0
    %p79 = por %p77, %p78
    %p80 = scmp.ne.s32.totalorder %s68, %s69
    %p81 = scmp.eq.s32.totalorder %s17, 1
    %p82 = por %p80, %p81
    %p84 = scmp.ne.s32.totalorder %s69, %s83
    %p85 = scmp.eq.s32.totalorder %s17, 0
    %p86 = por %p84, %p85
    %s88 = sadd.s32 %s87, 1
    %p91 = scmp.eq.s32.totalorder %s11, 1
    %p92 = scmp.ne.s32.totalorder %s87, %s89
    %p93 = scmp.eq.s32.totalorder %s11, 0
    %p94 = por %p92, %p93
    %p95 = scmp.ne.s32.totalorder %s87, %s89
    %p96 = scmp.eq.s32.totalorder %s16, 1
    %p97 = por %p95, %p96
    %p98 = scmp.ne.s32.totalorder %s89, %s90
    %p99 = scmp.eq.s32.totalorder %s16, 0
    %p100 = por %p98, %p99
    %p101 = scmp.ne.s32.totalorder %s89, %s90
    %p102 = scmp.eq.s32.totalorder %s17, 1
    %p103 = por %p101, %p102
    %p105 = scmp.ne.s32.totalorder %s90, %s104
    %p106 = scmp.eq.s32.totalorder %s17, 0
    %p107 = por %p105, %p106
    %s109 = sadd.s32 %s108, 1
    %p112 = scmp.eq.s32.totalorder %s11, 1
    %p113 = scmp.ne.s32.totalorder %s108, %s110
    %p114 = scmp.eq.s32.totalorder %s11, 0
    %p115 = por %p113, %p114
    %p116 = scmp.ne.s32.totalorder %s108, %s110
    %p117 = scmp.eq.s32.totalorder %s16, 1
    %p118 = por %p116, %p117
    %p119 = scmp.ne.s32.totalorder %s110, %s111
    %p120 = scmp.eq.s32.totalorder %s16, 0
    %p121 = por %p119, %p120
    %p122 = scmp.ne.s32.totalorder %s110, %s111
    %p123 = scmp.eq.s32.totalorder %s17, 1
    %p124 = por %p122, %p123
    %p126 = scmp.ne.s32.totalorder %s111, %s125
    %p127 = scmp.eq.s32.totalorder %s17, 0
    %p128 = por %p126, %p127
    %s129 = ssub.s32 %s11, %s18
    %p130 = scmp.eq.s32.totalorder %s129, 0
    %s132 = sadd.s32 %s131, 1
    %s133 = scalar_select %p130, %s131, %s132
    %p136 = pneg %p130
    %p137 = scmp.eq.s32.totalorder %s11, 1
    %p138 = por %p136, %p137
    %p139 = scmp.ne.s32.totalorder %s131, %s134
    %p140 = scmp.eq.s32.totalorder %s11, 0
    %p141 = por %p139, %p140
    %p142 = scmp.ne.s32.totalorder %s131, %s134
    %p143 = scmp.eq.s32.totalorder %s16, 1
    %p144 = por %p142, %p143
    %p145 = scmp.ne.s32.totalorder %s134, %s135
    %p146 = scmp.eq.s32.totalorder %s16, 0
    %p147 = por %p145, %p146
    %p148 = scmp.ne.s32.totalorder %s134, %s135
    %p149 = scmp.eq.s32.totalorder %s17, 1
    %p150 = por %p148, %p149
    %p152 = scmp.ne.s32.totalorder %s135, %s151
    %p153 = scmp.eq.s32.totalorder %s17, 0
    %p154 = por %p152, %p153
    %p155 = scmp.le.s32.totalorder 1, %s11
    %p156 = scmp.lt.s32.totalorder %s11, 3
    %p157 = pnand %p155, %p156
    %p158 = pneg %p157
    // Predicated region
    $region9: #{tpu_custom_call.1} parent=5 // pred_check
      _
    $region10: #{tpu_custom_call.1} parent=5 // pred_check_branch
      %160 = sbr.rel (%p157) target = $region12
    $region11: #{tpu_custom_call.1} parent=5 // pred_region
      %s161 = ssub.s32 %s11, 1
      // Predicated region
      $region13: #{tpu_custom_call.1} parent=11 // pred_check
        %p162 = pneg %p58
      $region14: #{tpu_custom_call.1} parent=11 // pred_check_branch
        %164 = sbr.rel (%p162) target = $region16
      $region15: #{tpu_custom_call.1} parent=11 // pred_region
        _
      $region16: #{tpu_custom_call.1} parent=11 // pred_fallthru
        _
      // Predicated region
      $region17: #{tpu_custom_call.1} parent=11 // pred_check
        %p165 = pneg %p79
      $region18: #{tpu_custom_call.1} parent=11 // pred_check_branch
        %167 = sbr.rel (%p165) target = $region20
      $region19: #{tpu_custom_call.1} parent=11 // pred_region
        _
      $region20: #{tpu_custom_call.1} parent=11 // pred_fallthru
        _
      // Predicated region
      $region21: #{tpu_custom_call.1} parent=11 // pred_check
        %p168 = pneg %p100
      $region22: #{tpu_custom_call.1} parent=11 // pred_check_branch
        %170 = sbr.rel (%p168) target = $region24
      $region23: #{tpu_custom_call.1} parent=11 // pred_region
        _
      $region24: #{tpu_custom_call.1} parent=11 // pred_fallthru
        _
      // Predicated region
      $region25: #{tpu_custom_call.1} parent=11 // pred_check
        %p171 = pneg %p121
      $region26: #{tpu_custom_call.1} parent=11 // pred_check_branch
        %173 = sbr.rel (%p171) target = $region28
      $region27: #{tpu_custom_call.1} parent=11 // pred_region
        _
      $region28: #{tpu_custom_call.1} parent=11 // pred_fallthru
        _
    $region12: #{tpu_custom_call.1} parent=5 // pred_fallthru
      _
    %p174 = scmp.lt.s32.totalorder %s11, 2
    // Predicated region
    $region29: #{tpu_custom_call.1} parent=5 // pred_check
      %p175 = pneg %p174
    $region30: #{tpu_custom_call.1} parent=5 // pred_check_branch
      %177 = sbr.rel (%p175) target = $region32
    $region31: #{tpu_custom_call.1} parent=5 // pred_region
      // Predicated region
      $region33: #{tpu_custom_call.1} parent=31 // pred_check
        %p178 = pneg %p31
      $region34: #{tpu_custom_call.1} parent=31 // pred_check_branch
        %180 = sbr.rel (%p178) target = $region36
      $region35: #{tpu_custom_call.1} parent=31 // pred_region
        %p181 = scmp.lt.s32.totalorder %s11, 1
        %s182 = scalar_select %p181, %s11, 1
        %s183 = smul.addr %s182, 32
        %s184 = smul.addr %s183, 8
        %s185 = scalar_lea.vmem %s0, %s184
      $region36: #{tpu_custom_call.1} parent=31 // pred_fallthru
        _
    $region32: #{tpu_custom_call.1} parent=5 // pred_fallthru
      _
    %p186 = scmp.le.s32.totalorder 1, %s11
    %p187 = scmp.lt.s32.totalorder %s11, 3
    %p188 = pnand %p186, %p187
    %p189 = pneg %p188
    // Predicated region
    $region37: #{tpu_custom_call.1} parent=5 // pred_check
      _
    $region38: #{tpu_custom_call.1} parent=5 // pred_check_branch
      %191 = sbr.rel (%p188) target = $region40
    $region39: #{tpu_custom_call.1} parent=5 // pred_region
      %s192 = ssub.s32 %s11, 1
      %p193 = scmp.lt.s32.totalorder %s16, 1
      %s194 = scalar_select %p193, %s16, 1
      %s195 = smul.addr %s194, 32
      %s196 = smul.addr %s195, 8
      %s197 = scalar_lea.vmem %s0, %s196
      %p198 = pneg %p37
      %p199 = pneg %p34
      %p200 = pneg %p58
      %p201 = pneg %p55
      %p202 = pneg %p79
      %p203 = pneg %p76
      %p204 = pneg %p100
      %p205 = pneg %p97
      %p206 = pneg %p121
      %p207 = pneg %p118
      %p208 = pneg %p147
      %p209 = pneg %p144
      %p210 = scmp.lt.s32.totalorder %s16, 1
      %s211 = scalar_select %p210, %s16, 1
      %s212 = smul.addr %s211, 32
      %s213 = smul.addr %s212, 4
      %s214 = scalar_lea.vmem %s5, %s213
      %p215 = scmp.lt.s32.totalorder %s16, 1
      %s216 = scalar_select %p215, %s16, 1
      %s217 = smul.addr %s216, 32
      %s218 = smul.addr %s217, 8
      %s219 = scalar_lea.vmem %s0, %s218
      %p220 = scmp.lt.s32.totalorder %s16, 1
      %s221 = scalar_select %p220, %s16, 1
      %s222 = smul.addr %s221, 32
      %s223 = smul.addr %s222, 4
      %s224 = scalar_lea.vmem %s5, %s223
      %v226 = vld [vmem:[%s219] sm:$0xff]
      %v227 = vld [vmem:[%s219 + $0x8] sm:$0xff]
      %v228 = vld [vmem:[%s219 + $0x10] sm:$0xff]
      %v229 = vld [vmem:[%s219 + $0x18] sm:$0xff]
      %v230 = vld [vmem:[%s219 + $0x20] sm:$0xff]
      %v231 = vld [vmem:[%s219 + $0x28] sm:$0xff]
      %v232 = vld [vmem:[%s219 + $0x30] sm:$0xff]
      %v233 = vld [vmem:[%s219 + $0x38] sm:$0xff]
      %v234 = vld [vmem:[%s219 + $0x40] sm:$0xff]
      %v235 = vld [vmem:[%s219 + $0x48] sm:$0xff]
      %v236 = vld [vmem:[%s219 + $0x50] sm:$0xff]
      %v237 = vld [vmem:[%s219 + $0x58] sm:$0xff]
      %v238 = vld [vmem:[%s219 + $0x60] sm:$0xff]
      %v239 = vld [vmem:[%s219 + $0x68] sm:$0xff]
      %v240 = vld [vmem:[%s219 + $0x70] sm:$0xff]
      %v241 = vld [vmem:[%s219 + $0x78] sm:$0xff]
      %v242 = vld [vmem:[%s219 + $0x80] sm:$0xff]
      %v243 = vld [vmem:[%s219 + $0x88] sm:$0xff]
      %v244 = vld [vmem:[%s219 + $0x90] sm:$0xff]
      %v245 = vld [vmem:[%s219 + $0x98] sm:$0xff]
      %v246 = vld [vmem:[%s219 + $0xa0] sm:$0xff]
      %v247 = vld [vmem:[%s219 + $0xa8] sm:$0xff]
      %v248 = vld [vmem:[%s219 + $0xb0] sm:$0xff]
      %v249 = vld [vmem:[%s219 + $0xb8] sm:$0xff]
      %v250 = vld [vmem:[%s219 + $0xc0] sm:$0xff]
      %v251 = vld [vmem:[%s219 + $0xc8] sm:$0xff]
      %v252 = vld [vmem:[%s219 + $0xd0] sm:$0xff]
      %v253 = vld [vmem:[%s219 + $0xd8] sm:$0xff]
      %v254 = vld [vmem:[%s219 + $0xe0] sm:$0xff]
      %v255 = vld [vmem:[%s219 + $0xe8] sm:$0xff]
      %v256 = vld [vmem:[%s219 + $0xf0] sm:$0xff]
      %v257 = vld [vmem:[%s219 + $0xf8] sm:$0xff]
      %vm258 = vcmask 31744
      %v259 = vsel %vm258, %v226, 0.0
      %v260 = vsel %vm258, %v227, 0.0
      %v261 = vadd.f32 %v259, %v260
      %v262 = vsel %vm258, %v228, 0.0
      %v263 = vadd.f32 %v261, %v262
      %v264 = vsel %vm258, %v229, 0.0
      %v265 = vadd.f32 %v263, %v264
      %v266 = vsel %vm258, %v230, 0.0
      %v267 = vadd.f32 %v265, %v266
      %v268 = vsel %vm258, %v231, 0.0
      %v269 = vadd.f32 %v267, %v268
      %v270 = vsel %vm258, %v232, 0.0
      %v271 = vadd.f32 %v269, %v270
      %v272 = vsel %vm258, %v233, 0.0
      %v273 = vadd.f32 %v271, %v272
      %v274 = vsel %vm258, %v234, 0.0
      %v275 = vadd.f32 %v273, %v274
      %v276 = vsel %vm258, %v235, 0.0
      %v277 = vadd.f32 %v275, %v276
      %v278 = vsel %vm258, %v236, 0.0
      %v279 = vadd.f32 %v277, %v278
      %v280 = vsel %vm258, %v237, 0.0
      %v281 = vadd.f32 %v279, %v280
      %v282 = vsel %vm258, %v238, 0.0
      %v283 = vadd.f32 %v281, %v282
      %v284 = vsel %vm258, %v239, 0.0
      %v285 = vadd.f32 %v283, %v284
      %v286 = vsel %vm258, %v240, 0.0
      %v287 = vadd.f32 %v285, %v286
      %v288 = vsel %vm258, %v241, 0.0
      %v289 = vadd.f32 %v287, %v288
      %v290 = vsel %vm258, %v242, 0.0
      %v291 = vadd.f32 %v289, %v290
      %v292 = vsel %vm258, %v243, 0.0
      %v293 = vadd.f32 %v291, %v292
      %v294 = vsel %vm258, %v244, 0.0
      %v295 = vadd.f32 %v293, %v294
      %v296 = vsel %vm258, %v245, 0.0
      %v297 = vadd.f32 %v295, %v296
      %v298 = vsel %vm258, %v246, 0.0
      %v299 = vadd.f32 %v297, %v298
      %v300 = vsel %vm258, %v247, 0.0
      %v301 = vadd.f32 %v299, %v300
      %v302 = vsel %vm258, %v248, 0.0
      %v303 = vadd.f32 %v301, %v302
      %v304 = vsel %vm258, %v249, 0.0
      %v305 = vadd.f32 %v303, %v304
      %v306 = vsel %vm258, %v250, 0.0
      %v307 = vadd.f32 %v305, %v306
      %v308 = vsel %vm258, %v251, 0.0
      %v309 = vadd.f32 %v307, %v308
      %v310 = vsel %vm258, %v252, 0.0
      %v311 = vadd.f32 %v309, %v310
      %v312 = vsel %vm258, %v253, 0.0
      %v313 = vadd.f32 %v311, %v312
      %v314 = vsel %vm258, %v254, 0.0
      %v315 = vadd.f32 %v313, %v314
      %v316 = vsel %vm258, %v255, 0.0
      %v317 = vadd.f32 %v315, %v316
      %v318 = vsel %vm258, %v256, 0.0
      %v319 = vadd.f32 %v317, %v318
      %v320 = vsel %vm258, %v257, 0.0
      %v321 = vadd.f32 %v319, %v320
      %v322 = vrot.slane %v321, 4
      %v323 = vadd.f32 %v321, %v322
      %v324 = vrot.slane %v323, 2
      %v325 = vadd.f32 %v323, %v324
      %v326 = vrot.slane %v325, 1
      %v327 = vadd.f32 %v325, %v326
      %v328 = vmul.f32 %v327, 0.00390625
      %v329 = vld [vmem:[%s1] sm:$0xf]
      %v331 = vsel %vm258, %v328, 0
      %vm333 = vcmask 1043456
      %v335 = vsel %vm333, %v329, 0
      %337 = vmatprep.subr.mxu0 0.0
      %338 = vmatpush1.msra.mxu0 %v335
      %339 = vmatprep.subr.mxu0 0.0
      %340 = vmatpush1.msra.mxu0 0.0
      %341 = vmatprep.subr.mxu0 0.0
      %342 = vmatpush1.msra.mxu0 0.0
      %343 = vmatprep.subr.mxu0 0.0
      %344 = vmatpush1.msra.mxu0 0.0
      %345 = vmatprep.subr.mxu0 0.0
      %346 = vmatpush1.msra.mxu0 0.0
      %347 = vmatprep.subr.mxu0 0.0
      %348 = vmatpush1.msra.mxu0 0.0
      %349 = vmatprep.subr.mxu0 0.0
      %350 = vmatpush1.msra.mxu0 0.0
      %351 = vmatprep.subr.mxu0 0.0
      %352 = vmatpush1.msra.mxu0 0.0
      %353 = vmatprep.subr.mxu0 0.0
      %354 = vmatpush1.msra.mxu0 0.0
      %355 = vmatprep.subr.mxu0 0.0
      %356 = vmatpush1.msra.mxu0 0.0
      %357 = vmatprep.subr.mxu0 0.0
      %358 = vmatpush1.msra.mxu0 0.0
      %359 = vmatprep.subr.mxu0 0.0
      %360 = vmatpush1.msra.mxu0 0.0
      %361 = vmatprep.subr.mxu0 0.0
      %362 = vmatpush1.msra.mxu0 0.0
      %363 = vmatprep.subr.mxu0 0.0
      %364 = vmatpush1.msra.mxu0 0.0
      %365 = vmatprep.subr.mxu0 0.0
      %366 = vmatpush1.msra.mxu0 0.0
      %367 = vmatprep.subr.mxu0 0.0
      %368 = vmatpush1.msra.mxu0 0.0
      %369 = vmatprep.subr.mxu0 0.0
      %370 = vmatpush1.msra.mxu0 0.0
      %371 = vmatprep.subr.mxu0 0.0
      %372 = vmatpush1.msra.mxu0 0.0
      %373 = vmatprep.subr.mxu0 0.0
      %374 = vmatpush1.msra.mxu0 0.0
      %375 = vmatprep.subr.mxu0 0.0
      %376 = vmatpush1.msra.mxu0 0.0
      %377 = vmatprep.subr.mxu0 0.0
      %378 = vmatpush1.msra.mxu0 0.0
      %379 = vmatprep.subr.mxu0 0.0
      %380 = vmatpush1.msra.mxu0 0.0
      %381 = vmatprep.subr.mxu0 0.0
      %382 = vmatpush1.msra.mxu0 0.0
      %383 = vmatprep.subr.mxu0 0.0
      %384 = vmatpush1.msra.mxu0 0.0
      %385 = vmatprep.subr.mxu0 0.0
      %386 = vmatpush1.msra.mxu0 0.0
      %387 = vmatprep.subr.mxu0 0.0
      %388 = vmatpush1.msra.mxu0 0.0
      %389 = vmatprep.subr.mxu0 0.0
      %390 = vmatpush1.msra.mxu0 0.0
      %391 = vmatprep.subr.mxu0 0.0
      %392 = vmatpush1.msra.mxu0 0.0
      %393 = vmatprep.subr.mxu0 0.0
      %394 = vmatpush1.msra.mxu0 0.0
      %395 = vmatprep.subr.mxu0 0.0
      %396 = vmatpush1.msra.mxu0 0.0
      %397 = vmatprep.subr.mxu0 0.0
      %398 = vmatpush1.msra.mxu0 0.0
      %399 = vmatprep.subr.mxu0 0.0
      %400 = vmatpush1.msra.mxu0 0.0
      %401 = vmatprep.mubr.f32.mxu0 0.0
      %402 = vmatmul.mubr.f32.gmra.mrb[0].mxu0 %v331
      %v403 = vpop.f32.mrb[0].mxu0
      %v404 = vadd.f32 0.0, %v403
      %v405 = vpop.f32.mrb[0].mxu0
      %406 = vdwg.mxu0
      %v407 = vld [vmem:[%s2] sm:$0x1]
      %v408 = vmul.f32 %v404, %v407
      %v409 = vld [vmem:[%s3] sm:$0x1]
      %v410 = vadd.f32 %v408, %v409
      %v411 = vxor.u32 %v410, 2147483648
      %v412 = vmul.f32 %v411, 1.442695
      %v413 = vpow.pop %v412
      %v414 = vadd.f32 %v413, 1.0
      %v415 = vrcp.pop %v414
      %v416 = vmul.f32 1.0, %v415
      %v417 = vadd.f32 %v416, 1.0
      %v418 = vlaneseq
      %v419 = vshrl.u32 %v418, 7
      %v420 = vsub.s32 0, %v419
      %v421 = vrot.slane %v417, %v420
      %v422 = vmul.f32 %v226, %v421
      %v423 = vmul.f32 %v227, %v421
      %v424 = vmul.f32 %v228, %v421
      %v425 = vmul.f32 %v229, %v421
      %v426 = vmul.f32 %v230, %v421
      %v427 = vmul.f32 %v231, %v421
      %v428 = vmul.f32 %v232, %v421
      %v429 = vmul.f32 %v233, %v421
      %v430 = vmul.f32 %v234, %v421
      %v431 = vmul.f32 %v235, %v421
      %v432 = vmul.f32 %v236, %v421
      %v433 = vmul.f32 %v237, %v421
      %v434 = vmul.f32 %v238, %v421
      %v435 = vmul.f32 %v239, %v421
      %v436 = vmul.f32 %v240, %v421
      %v437 = vmul.f32 %v241, %v421
      %v438 = vmul.f32 %v242, %v421
      %v439 = vmul.f32 %v243, %v421
      %v440 = vmul.f32 %v244, %v421
      %v441 = vmul.f32 %v245, %v421
      %v442 = vmul.f32 %v246, %v421
      %v443 = vmul.f32 %v247, %v421
      %v444 = vmul.f32 %v248, %v421
      %v445 = vmul.f32 %v249, %v421
      %v446 = vmul.f32 %v250, %v421
      %v447 = vmul.f32 %v251, %v421
      %v448 = vmul.f32 %v252, %v421
      %v449 = vmul.f32 %v253, %v421
      %v450 = vmul.f32 %v254, %v421
      %v451 = vmul.f32 %v255, %v421
      %v452 = vmul.f32 %v256, %v421
      %v453 = vmul.f32 %v257, %v421
      %v454 = vpack.c.bf16 %v423, %v422
      %v455 = vpack.c.bf16 %v425, %v424
      %v456 = vpack.c.bf16 %v427, %v426
      %v457 = vpack.c.bf16 %v429, %v428
      %v458 = vpack.c.bf16 %v431, %v430
      %v459 = vpack.c.bf16 %v433, %v432
      %v460 = vpack.c.bf16 %v435, %v434
      %v461 = vpack.c.bf16 %v437, %v436
      %v462 = vpack.c.bf16 %v439, %v438
      %v463 = vpack.c.bf16 %v441, %v440
      %v464 = vpack.c.bf16 %v443, %v442
      %v465 = vpack.c.bf16 %v445, %v444
      %v466 = vpack.c.bf16 %v447, %v446
      %v467 = vpack.c.bf16 %v449, %v448
      %v468 = vpack.c.bf16 %v451, %v450
      %v469 = vpack.c.bf16 %v453, %v452
      %v470 = vld [vmem:[%s4] sm:$0x3]
      %v472 = vsel %vm258, %v454, 0
      %v475 = vsel %vm258, %v455, 0
      %v478 = vsel %vm258, %v456, 0
      %v481 = vsel %vm258, %v457, 0
      %v484 = vsel %vm258, %v458, 0
      %v487 = vsel %vm258, %v459, 0
      %v490 = vsel %vm258, %v460, 0
      %v493 = vsel %vm258, %v461, 0
      %v496 = vsel %vm258, %v462, 0
      %v499 = vsel %vm258, %v463, 0
      %v502 = vsel %vm258, %v464, 0
      %v505 = vsel %vm258, %v465, 0
      %v508 = vsel %vm258, %v466, 0
      %v511 = vsel %vm258, %v467, 0
      %v514 = vsel %vm258, %v468, 0
      %v517 = vsel %vm258, %v469, 0
      %vm519 = vcmask 1041408
      %v521 = vsel %vm519, %v470, 0
      %523 = vmatprep.subr.bf16.mxu0 0
      %524 = vmatpush1.bf16.msra.mxu0 %v521
      %525 = vmatprep.subr.bf16.mxu0 0
      %526 = vmatpush1.bf16.msra.mxu0 0
      %527 = vmatprep.subr.bf16.mxu0 0
      %528 = vmatpush1.bf16.msra.mxu0 0
      %529 = vmatprep.subr.bf16.mxu0 0
      %530 = vmatpush1.bf16.msra.mxu0 0
      %531 = vmatprep.subr.bf16.mxu0 0
      %532 = vmatpush1.bf16.msra.mxu0 0
      %533 = vmatprep.subr.bf16.mxu0 0
      %534 = vmatpush1.bf16.msra.mxu0 0
      %535 = vmatprep.subr.bf16.mxu0 0
      %536 = vmatpush1.bf16.msra.mxu0 0
      %537 = vmatprep.subr.bf16.mxu0 0
      %538 = vmatpush1.bf16.msra.mxu0 0
      %539 = vmatprep.subr.bf16.mxu0 0
      %540 = vmatpush1.bf16.msra.mxu0 0
      %541 = vmatprep.subr.bf16.mxu0 0
      %542 = vmatpush1.bf16.msra.mxu0 0
      %543 = vmatprep.subr.bf16.mxu0 0
      %544 = vmatpush1.bf16.msra.mxu0 0
      %545 = vmatprep.subr.bf16.mxu0 0
      %546 = vmatpush1.bf16.msra.mxu0 0
      %547 = vmatprep.subr.bf16.mxu0 0
      %548 = vmatpush1.bf16.msra.mxu0 0
      %549 = vmatprep.subr.bf16.mxu0 0
      %550 = vmatpush1.bf16.msra.mxu0 0
      %551 = vmatprep.subr.bf16.mxu0 0
      %552 = vmatpush1.bf16.msra.mxu0 0
      %553 = vmatprep.subr.bf16.mxu0 0
      %554 = vmatpush1.bf16.msra.mxu0 0
      %555 = vmatprep.mubr.bf16.mxu0 0
      %556 = vmatmul.mubr.bf16.gmra.mrb[0].mxu0 %v472
      %v557 = vpop.f32.mrb[0].mxu0
      %v558 = vadd.f32 0.0, %v557
      %v559 = vpop.f32.mrb[0].mxu0
      %v560 = vpop.f32.mrb[0].mxu0
      %v561 = vadd.f32 0.0, %v560
      %v562 = vpop.f32.mrb[0].mxu0
      %563 = vmatprep.mubr.bf16.mxu0 0
      %564 = vmatmul.mubr.bf16.gmra.mrb[0].mxu0 %v475
      %v565 = vpop.f32.mrb[0].mxu0
      %v566 = vadd.f32 0.0, %v565
      %v567 = vpop.f32.mrb[0].mxu0
      %v568 = vpop.f32.mrb[0].mxu0
      %v569 = vadd.f32 0.0, %v568
      %v570 = vpop.f32.mrb[0].mxu0
      %571 = vmatprep.mubr.bf16.mxu0 0
      %572 = vmatmul.mubr.bf16.gmra.mrb[0].mxu0 %v478
      %v573 = vpop.f32.mrb[0].mxu0
      %v574 = vadd.f32 0.0, %v573
      %v575 = vpop.f32.mrb[0].mxu0
      %v576 = vpop.f32.mrb[0].mxu0
      %v577 = vadd.f32 0.0, %v576
      %v578 = vpop.f32.mrb[0].mxu0
      %579 = vmatprep.mubr.bf16.mxu0 0
      %580 = vmatmul.mubr.bf16.gmra.mrb[0].mxu0 %v481
      %v581 = vpop.f32.mrb[0].mxu0
      %v582 = vadd.f32 0.0, %v581
      %v583 = vpop.f32.mrb[0].mxu0
      %v584 = vpop.f32.mrb[0].mxu0
      %v585 = vadd.f32 0.0, %v584
      %v586 = vpop.f32.mrb[0].mxu0
      %587 = vmatprep.mubr.bf16.mxu0 0
      %588 = vmatmul.mubr.bf16.gmra.mrb[0].mxu0 %v484
      %v589 = vpop.f32.mrb[0].mxu0
      %v590 = vadd.f32 0.0, %v589
      %v591 = vpop.f32.mrb[0].mxu0
      %v592 = vpop.f32.mrb[0].mxu0
      %v593 = vadd.f32 0.0, %v592
      %v594 = vpop.f32.mrb[0].mxu0
      %595 = vmatprep.mubr.bf16.mxu0 0
      %596 = vmatmul.mubr.bf16.gmra.mrb[0].mxu0 %v487
      %v597 = vpop.f32.mrb[0].mxu0
      %v598 = vadd.f32 0.0, %v597
      %v599 = vpop.f32.mrb[0].mxu0
      %v600 = vpop.f32.mrb[0].mxu0
      %v601 = vadd.f32 0.0, %v600
      %v602 = vpop.f32.mrb[0].mxu0
      %603 = vmatprep.mubr.bf16.mxu0 0
      %604 = vmatmul.mubr.bf16.gmra.mrb[0].mxu0 %v490
      %v605 = vpop.f32.mrb[0].mxu0
      %v606 = vadd.f32 0.0, %v605
      %v607 = vpop.f32.mrb[0].mxu0
      %v608 = vpop.f32.mrb[0].mxu0
      %v609 = vadd.f32 0.0, %v608
      %v610 = vpop.f32.mrb[0].mxu0
      %611 = vmatprep.mubr.bf16.mxu0 0
      %612 = vmatmul.mubr.bf16.gmra.mrb[0].mxu0 %v493
      %v613 = vpop.f32.mrb[0].mxu0
      %v614 = vadd.f32 0.0, %v613
      %v615 = vpop.f32.mrb[0].mxu0
      %v616 = vpop.f32.mrb[0].mxu0
      %v617 = vadd.f32 0.0, %v616
      %v618 = vpop.f32.mrb[0].mxu0
      %619 = vmatprep.mubr.bf16.mxu0 0
      %620 = vmatmul.mubr.bf16.gmra.mrb[0].mxu0 %v496
      %v621 = vpop.f32.mrb[0].mxu0
      %v622 = vadd.f32 0.0, %v621
      %v623 = vpop.f32.mrb[0].mxu0
      %v624 = vpop.f32.mrb[0].mxu0
      %v625 = vadd.f32 0.0, %v624
      %v626 = vpop.f32.mrb[0].mxu0
      %627 = vmatprep.mubr.bf16.mxu0 0
      %628 = vmatmul.mubr.bf16.gmra.mrb[0].mxu0 %v499
      %v629 = vpop.f32.mrb[0].mxu0
      %v630 = vadd.f32 0.0, %v629
      %v631 = vpop.f32.mrb[0].mxu0
      %v632 = vpop.f32.mrb[0].mxu0
      %v633 = vadd.f32 0.0, %v632
      %v634 = vpop.f32.mrb[0].mxu0
      %635 = vmatprep.mubr.bf16.mxu0 0
      %636 = vmatmul.mubr.bf16.gmra.mrb[0].mxu0 %v502
      %v637 = vpop.f32.mrb[0].mxu0
      %v638 = vadd.f32 0.0, %v637
      %v639 = vpop.f32.mrb[0].mxu0
      %v640 = vpop.f32.mrb[0].mxu0
      %v641 = vadd.f32 0.0, %v640
      %v642 = vpop.f32.mrb[0].mxu0
      %643 = vmatprep.mubr.bf16.mxu0 0
      %644 = vmatmul.mubr.bf16.gmra.mrb[0].mxu0 %v505
      %v645 = vpop.f32.mrb[0].mxu0
      %v646 = vadd.f32 0.0, %v645
      %v647 = vpop.f32.mrb[0].mxu0
      %v648 = vpop.f32.mrb[0].mxu0
      %v649 = vadd.f32 0.0, %v648
      %v650 = vpop.f32.mrb[0].mxu0
      %651 = vmatprep.mubr.bf16.mxu0 0
      %652 = vmatmul.mubr.bf16.gmra.mrb[0].mxu0 %v508
      %v653 = vpop.f32.mrb[0].mxu0
      %v654 = vadd.f32 0.0, %v653
      %v655 = vpop.f32.mrb[0].mxu0
      %v656 = vpop.f32.mrb[0].mxu0
      %v657 = vadd.f32 0.0, %v656
      %v658 = vpop.f32.mrb[0].mxu0
      %659 = vmatprep.mubr.bf16.mxu0 0
      %660 = vmatmul.mubr.bf16.gmra.mrb[0].mxu0 %v511
      %v661 = vpop.f32.mrb[0].mxu0
      %v662 = vadd.f32 0.0, %v661
      %v663 = vpop.f32.mrb[0].mxu0
      %v664 = vpop.f32.mrb[0].mxu0
      %v665 = vadd.f32 0.0, %v664
      %v666 = vpop.f32.mrb[0].mxu0
      %667 = vmatprep.mubr.bf16.mxu0 0
      %668 = vmatmul.mubr.bf16.gmra.mrb[0].mxu0 %v514
      %v669 = vpop.f32.mrb[0].mxu0
      %v670 = vadd.f32 0.0, %v669
      %v671 = vpop.f32.mrb[0].mxu0
      %v672 = vpop.f32.mrb[0].mxu0
      %v673 = vadd.f32 0.0, %v672
      %v674 = vpop.f32.mrb[0].mxu0
      %675 = vmatprep.mubr.bf16.mxu0 0
      %676 = vmatmul.mubr.bf16.gmra.mrb[0].mxu0 %v517
      %v677 = vpop.f32.mrb[0].mxu0
      %v678 = vadd.f32 0.0, %v677
      %v679 = vpop.f32.mrb[0].mxu0
      %v680 = vpop.f32.mrb[0].mxu0
      %v681 = vadd.f32 0.0, %v680
      %v682 = vpop.f32.mrb[0].mxu0
      %683 = vdwg.mxu0
      %v684 = vpack.c.bf16 %v561, %v558
      %v685 = vpack.c.bf16 %v569, %v566
      %v686 = vpack.c.bf16 %v577, %v574
      %v687 = vpack.c.bf16 %v585, %v582
      %v688 = vpack.c.bf16 %v593, %v590
      %v689 = vpack.c.bf16 %v601, %v598
      %v690 = vpack.c.bf16 %v609, %v606
      %v691 = vpack.c.bf16 %v617, %v614
      %v692 = vpack.c.bf16 %v625, %v622
      %v693 = vpack.c.bf16 %v633, %v630
      %v694 = vpack.c.bf16 %v641, %v638
      %v695 = vpack.c.bf16 %v649, %v646
      %v696 = vpack.c.bf16 %v657, %v654
      %v697 = vpack.c.bf16 %v665, %v662
      %v698 = vpack.c.bf16 %v673, %v670
      %v699 = vpack.c.bf16 %v681, %v678
      %v716 = vunpack.c.l.b16 %v684
      %v717 = vunpack.c.h.b16 %v684
      %v718 = vunpack.c.l.b16 %v685
      %v719 = vunpack.c.h.b16 %v685
      %v720 = vunpack.c.l.b16 %v686
      %v721 = vunpack.c.h.b16 %v686
      %v722 = vunpack.c.l.b16 %v687
      %v723 = vunpack.c.h.b16 %v687
      %v724 = vunpack.c.l.b16 %v688
      %v725 = vunpack.c.h.b16 %v688
      %v726 = vunpack.c.l.b16 %v689
      %v727 = vunpack.c.h.b16 %v689
      %v728 = vunpack.c.l.b16 %v690
      %v729 = vunpack.c.h.b16 %v690
      %v730 = vunpack.c.l.b16 %v691
      %v731 = vunpack.c.h.b16 %v691
      %v732 = vunpack.c.l.b16 %v692
      %v733 = vunpack.c.h.b16 %v692
      %v734 = vunpack.c.l.b16 %v693
      %v735 = vunpack.c.h.b16 %v693
      %v736 = vunpack.c.l.b16 %v694
      %v737 = vunpack.c.h.b16 %v694
      %v738 = vunpack.c.l.b16 %v695
      %v739 = vunpack.c.h.b16 %v695
      %v740 = vunpack.c.l.b16 %v696
      %v741 = vunpack.c.h.b16 %v696
      %v742 = vunpack.c.l.b16 %v697
      %v743 = vunpack.c.h.b16 %v697
      %v744 = vunpack.c.l.b16 %v698
      %v745 = vunpack.c.h.b16 %v698
      %v746 = vunpack.c.l.b16 %v699
      %v747 = vunpack.c.h.b16 %v699
      %v748 = vpack.c.b16 %v716, %v716
      %v749 = vpack.c.b16 %v717, %v717
      %v750 = vpack.c.b16 %v718, %v718
      %v751 = vpack.c.b16 %v719, %v719
      %v752 = vpack.c.b16 %v720, %v720
      %v753 = vpack.c.b16 %v721, %v721
      %v754 = vpack.c.b16 %v722, %v722
      %v755 = vpack.c.b16 %v723, %v723
      %v756 = vpack.c.b16 %v724, %v724
      %v757 = vpack.c.b16 %v725, %v725
      %v758 = vpack.c.b16 %v726, %v726
      %v759 = vpack.c.b16 %v727, %v727
      %v760 = vpack.c.b16 %v728, %v728
      %v761 = vpack.c.b16 %v729, %v729
      %v762 = vpack.c.b16 %v730, %v730
      %v763 = vpack.c.b16 %v731, %v731
      %v764 = vpack.c.b16 %v732, %v732
      %v765 = vpack.c.b16 %v733, %v733
      %v766 = vpack.c.b16 %v734, %v734
      %v767 = vpack.c.b16 %v735, %v735
      %v768 = vpack.c.b16 %v736, %v736
      %v769 = vpack.c.b16 %v737, %v737
      %v770 = vpack.c.b16 %v738, %v738
      %v771 = vpack.c.b16 %v739, %v739
      %v772 = vpack.c.b16 %v740, %v740
      %v773 = vpack.c.b16 %v741, %v741
      %v774 = vpack.c.b16 %v742, %v742
      %v775 = vpack.c.b16 %v743, %v743
      %v776 = vpack.c.b16 %v744, %v744
      %v777 = vpack.c.b16 %v745, %v745
      %v778 = vpack.c.b16 %v746, %v746
      %v779 = vpack.c.b16 %v747, %v747
      %vm812 = vcmask 60416
      %813 = vst.msk [vmem:[%s224] sm:$0xf] %vm812, %v748
      %814 = vst.msk [vmem:[%s224 + $0x4] sm:$0xf] %vm812, %v749
      %815 = vst.msk [vmem:[%s224 + $0x8] sm:$0xf] %vm812, %v750
      %816 = vst.msk [vmem:[%s224 + $0xc] sm:$0xf] %vm812, %v751
      %817 = vst.msk [vmem:[%s224 + $0x10] sm:$0xf] %vm812, %v752
      %818 = vst.msk [vmem:[%s224 + $0x14] sm:$0xf] %vm812, %v753
      %819 = vst.msk [vmem:[%s224 + $0x18] sm:$0xf] %vm812, %v754
      %820 = vst.msk [vmem:[%s224 + $0x1c] sm:$0xf] %vm812, %v755
      %821 = vst.msk [vmem:[%s224 + $0x20] sm:$0xf] %vm812, %v756
      %822 = vst.msk [vmem:[%s224 + $0x24] sm:$0xf] %vm812, %v757
      %823 = vst.msk [vmem:[%s224 + $0x28] sm:$0xf] %vm812, %v758
      %824 = vst.msk [vmem:[%s224 + $0x2c] sm:$0xf] %vm812, %v759
      %825 = vst.msk [vmem:[%s224 + $0x30] sm:$0xf] %vm812, %v760
      %826 = vst.msk [vmem:[%s224 + $0x34] sm:$0xf] %vm812, %v761
      %827 = vst.msk [vmem:[%s224 + $0x38] sm:$0xf] %vm812, %v762
      %828 = vst.msk [vmem:[%s224 + $0x3c] sm:$0xf] %vm812, %v763
      %829 = vst.msk [vmem:[%s224 + $0x40] sm:$0xf] %vm812, %v764
      %830 = vst.msk [vmem:[%s224 + $0x44] sm:$0xf] %vm812, %v765
      %831 = vst.msk [vmem:[%s224 + $0x48] sm:$0xf] %vm812, %v766
      %832 = vst.msk [vmem:[%s224 + $0x4c] sm:$0xf] %vm812, %v767
      %833 = vst.msk [vmem:[%s224 + $0x50] sm:$0xf] %vm812, %v768
      %834 = vst.msk [vmem:[%s224 + $0x54] sm:$0xf] %vm812, %v769
      %835 = vst.msk [vmem:[%s224 + $0x58] sm:$0xf] %vm812, %v770
      %836 = vst.msk [vmem:[%s224 + $0x5c] sm:$0xf] %vm812, %v771
      %837 = vst.msk [vmem:[%s224 + $0x60] sm:$0xf] %vm812, %v772
      %838 = vst.msk [vmem:[%s224 + $0x64] sm:$0xf] %vm812, %v773
      %839 = vst.msk [vmem:[%s224 + $0x68] sm:$0xf] %vm812, %v774
      %840 = vst.msk [vmem:[%s224 + $0x6c] sm:$0xf] %vm812, %v775
      %841 = vst.msk [vmem:[%s224 + $0x70] sm:$0xf] %vm812, %v776
      %842 = vst.msk [vmem:[%s224 + $0x74] sm:$0xf] %vm812, %v777
      %843 = vst.msk [vmem:[%s224 + $0x78] sm:$0xf] %vm812, %v778
      %844 = vst.msk [vmem:[%s224 + $0x7c] sm:$0xf] %vm812, %v779
      %p845 = scmp.lt.s32.totalorder %s16, 1
      %s846 = scalar_select %p845, %s16, 1
      %s847 = smul.addr %s846, 32
      %s848 = smul.addr %s847, 4
      %s849 = scalar_lea.vmem %s5, %s848
      // Predicated region
      $region41: #{tpu_custom_call.1} parent=39 // pred_check
        %p850 = pneg %p144
      $region42: #{tpu_custom_call.1} parent=39 // pred_check_branch
        %852 = sbr.rel (%p850) target = $region44
      $region43: #{tpu_custom_call.1} parent=39 // pred_region
        _
      $region44: #{tpu_custom_call.1} parent=39 // pred_fallthru
        _
    $region40: #{tpu_custom_call.1} parent=5 // pred_fallthru
      _
    %p853 = scmp.le.s32.totalorder 2, %s11
    // Predicated region
    $region45: #{tpu_custom_call.1} parent=5 // pred_check
      %p854 = pneg %p853
    $region46: #{tpu_custom_call.1} parent=5 // pred_check_branch
      %856 = sbr.rel (%p854) target = $region48
    $region47: #{tpu_custom_call.1} parent=5 // pred_region
      %s857 = ssub.s32 %s11, 2
      // Predicated region
      $region49: #{tpu_custom_call.1} parent=47 // pred_check
        %p858 = pneg %p150
      $region50: #{tpu_custom_call.1} parent=47 // pred_check_branch
        %860 = sbr.rel (%p858) target = $region52
      $region51: #{tpu_custom_call.1} parent=47 // pred_region
        %p861 = scmp.lt.s32.totalorder %s17, 1
        %s862 = scalar_select %p861, %s17, 1
        %s863 = smul.addr %s862, 32
        %s864 = smul.addr %s863, 4
        %s865 = scalar_lea.vmem %s5, %s864
      $region52: #{tpu_custom_call.1} parent=47 // pred_fallthru
        _
    $region48: #{tpu_custom_call.1} parent=5 // pred_fallthru
      _
  $region6: #{tpu_custom_call.1} parent=0 // loop_footer
    %s15 = sadd.s32 1, %s11
  $region7: #{tpu_custom_call.1} parent=0 // loop_footer_branch
    %10 = sbr.rel target = $region3
  $region8: #{tpu_custom_call.1} parent=0 // loop_exit
    _

</llo_original>
